<compile_context>
chip_gen: v7x
topology: tpu7x:2x2x1
jax: 0.10.0
libtpu: 0.0.40
codegen_flags: <defaults>
</compile_context>

<pallas_src>
import functools

import jax
import jax.numpy as jnp
from jax import lax
from jax.experimental import pallas as pl
from jax.experimental.pallas import tpu as pltpu

_LANE = 128
_SUBLANE = 8


def _round_up(x, m):
    return ((x + m - 1) // m) * m


def _vmem_cap_bytes():
    """Scoped-VMEM budget: ~3/4 of per-core physical VMEM (leaves headroom for
    compiler-internal scratch; v7x only has 64 MiB per TensorCore)."""
    try:
        cap = int(pltpu.get_tpu_info().vmem_capacity_bytes)
        return min((cap * 3) // 4, 96 << 20)
    except Exception:  # hardware query unavailable -> conservative (v7x-safe)
        return 48 << 20


def _leaky_relu(h, leaky):
    if 0.0 <= leaky <= 1.0:
        return jnp.maximum(h, leaky * h)      # 1 vmul + 1 vmax
    return jnp.where(h > 0, h, leaky * h)     # general slope


# --------------------------------------------------------------------------- #
# Kernels (feature-minor layout: activations are (features, batch_tile))
# --------------------------------------------------------------------------- #
def _mlp_kernel_resident(x_ref, w_in_ref, b_in_ref, w_mid_ref, b_mid_ref,
                         w_out_ref, b_out_ref, o_ref, *, num_mid_layers, leaky):
    """All weights resident in VMEM; grid is 1-D over batch tiles.

    x_ref    : (nx_p, TB)        bf16
    w_in_ref : (M_p, nx_p)       bf16    b_in_ref : (M_p, 1)   f32
    w_mid_ref: (Lm_b, M_p, M_p)  bf16    b_mid_ref: (Lm_b, M_p, 1) f32
    w_out_ref: (nu_p, M_p)       bf16    b_out_ref: (nu_p, 1)  f32
    o_ref    : (nu_p, TB)        f32
    """
    h = jnp.dot(w_in_ref[...], x_ref[...],
                preferred_element_type=jnp.float32) + b_in_ref[...]
    h = _leaky_relu(h, leaky)

    def mid(i, h):
        h = jnp.dot(w_mid_ref[i], h.astype(jnp.bfloat16),
                    preferred_element_type=jnp.float32) + b_mid_ref[i]
        return _leaky_relu(h, leaky)

    if num_mid_layers > 0:
        if num_mid_layers <= 4:
            for i in range(num_mid_layers):     # small static unroll
                h = mid(i, h)
        else:
            # bound vreg live ranges for deep stacks, keep LLO visibility
            h = lax.fori_loop(0, num_mid_layers, mid, h, unroll=True)

    y = jnp.dot(w_out_ref[...], h.astype(jnp.bfloat16),
                preferred_element_type=jnp.float32) + b_out_ref[...]
    o_ref[...] = jnp.maximum(y, 0.0).astype(o_ref.dtype)


def _mlp_kernel_streamed(x_ref, w_in_ref, b_in_ref, w_mid_ref, b_mid_ref,
                         w_out_ref, b_out_ref, o_ref, h_ref,
                         *, num_mid_layers, leaky):
    """Mid-layer weights streamed one layer per grid step (axis 1, 'arbitrary');
    the hidden activation is carried across steps in VMEM scratch `h_ref`.

    w_mid_ref: (1, M_p, M_p) bf16 (layer l)   b_mid_ref: (1, M_p, 1) f32
    h_ref    : (M_p, TB) f32 scratch
    """
    l = pl.program_id(1)

    @pl.when(l == 0)
    def _():
        h = jnp.dot(w_in_ref[...], x_ref[...],
                    preferred_element_type=jnp.float32) + b_in_ref[...]
        h_ref[...] = _leaky_relu(h, leaky)

    if num_mid_layers > 0:
        h = jnp.dot(w_mid_ref[0], h_ref[...].astype(jnp.bfloat16),
                    preferred_element_type=jnp.float32) + b_mid_ref[0]
        h_ref[...] = _leaky_relu(h, leaky)

    @pl.when(l == pl.num_programs(1) - 1)
    def _():
        y = jnp.dot(w_out_ref[...], h_ref[...].astype(jnp.bfloat16),
                    preferred_element_type=jnp.float32) + b_out_ref[...]
        o_ref[...] = jnp.maximum(y, 0.0).astype(o_ref.dtype)


# --------------------------------------------------------------------------- #
# Wrapper
# --------------------------------------------------------------------------- #
def custom_quantized_net_forward(x, params, *, leaky, batch_tile=None,
                                 stream_mid_weights=None):
    """Run the fused MLP Pallas kernel.

    x      : (B, nx) float32
    params : dict with 'w_in' (nx,M), 'b_in' (1,M),
             'w_mid' (L-1,M,M), 'b_mid' (L-1,1,M),
             'w_out' (M,nu), 'b_out' (1,nu)   (all f32, = PyTorch W.T / b)
    """
    B, nx = x.shape
    M = params["w_in"].shape[1]
    nu = params["w_out"].shape[1]
    Lm = params["w_mid"].shape[0]

    # Feature dims only need sublane (8) padding in the feature-minor layout.
    # NOTE: for very large M on v6e/v7x one could round K/N up to 256 to fill
    # the 256x256 MXU, but at these sizes the kernel is DMA-bound, not MXU.
    nx_p = _round_up(nx, _SUBLANE)
    M_p = _round_up(M, _SUBLANE)
    nu_p = _round_up(nu, _SUBLANE)

    # ---- kernel-layout parameters: weights (out,in) bf16, biases (out,1) f32
    w_in = jnp.pad(params["w_in"].T,
                   ((0, M_p - M), (0, nx_p - nx))).astype(jnp.bfloat16)
    b_in = jnp.pad(params["b_in"].T, ((0, M_p - M), (0, 0))).astype(jnp.float32)
    w_out = jnp.pad(params["w_out"].T,
                    ((0, nu_p - nu), (0, M_p - M))).astype(jnp.bfloat16)
    b_out = jnp.pad(params["b_out"].T,
                    ((0, nu_p - nu), (0, 0))).astype(jnp.float32)
    if Lm > 0:
        w_mid = jnp.pad(jnp.swapaxes(params["w_mid"], 1, 2),
                        ((0, 0), (0, M_p - M), (0, M_p - M))).astype(jnp.bfloat16)
        b_mid = jnp.pad(jnp.swapaxes(params["b_mid"], 1, 2),
                        ((0, 0), (0, M_p - M), (0, 0))).astype(jnp.float32)
        Lm_b = Lm
    else:
        # Dummy (never read) so BlockSpec shapes stay non-degenerate.
        w_mid = jnp.zeros((1, M_p, M_p), jnp.bfloat16)
        b_mid = jnp.zeros((1, M_p, 1), jnp.float32)
        Lm_b = 1

    def _nbytes(a):
        return a.size * a.dtype.itemsize

    vmem_cap = _vmem_cap_bytes()
    small_param_bytes = (_nbytes(w_in) + _nbytes(b_in) + _nbytes(w_out)
                         + _nbytes(b_out) + _nbytes(b_mid))
    mid_w_bytes = _nbytes(w_mid) if Lm > 0 else 0

    # Stream mid-layer weights (one (M,M) block per grid step) once keeping all
    # of them resident (x2 for Pallas' default double-buffering) would eat more
    # than half of the scoped-VMEM budget.  Demo shapes stay on the resident path.
    if stream_mid_weights is None:
        stream_mid_weights = (Lm > 0) and (2 * mid_w_bytes > vmem_cap // 2)

    if stream_mid_weights:
        resident_bytes = 2 * (small_param_bytes + 2 * M_p * M_p * 2)  # 1 layer, dbl-buf
    else:
        resident_bytes = 2 * (small_param_bytes + mid_w_bytes)

    # Per-batch-column VMEM cost: double-buffered bf16 x tile + f32 out tile,
    # plus ~2 copies of the f32 hidden activation (scratch / temporaries).
    per_col = 2 * (nx_p * 2) + 2 * (nu_p * 4) + 2 * M_p * 4

    # ---- batch tiling: batch lives on lanes -> tiles are multiples of 128 ----
    if batch_tile is None:
        avail = max(vmem_cap - resident_bytes - (8 << 20), per_col * _LANE)
        cap = max(_LANE, min(2048, (avail // per_col) // _LANE * _LANE))
        B128 = _round_up(B, _LANE)
        if B128 <= _LANE:
            batch_tile = _LANE                      # single step for tiny batches
        else:
            # aim for >= 4 grid steps (>= 2 per v7x TensorCore) within budget
            batch_tile = int(min(cap, max(_LANE, _round_up(pl.cdiv(B128, 4),
                                                           _LANE))))
    batch_tile = _round_up(batch_tile, _LANE)
    B_p = _round_up(B, batch_tile)
    nb = B_p // batch_tile

    # x streamed in bf16, feature-minor (nx_p sublanes x B_p lanes)
    x_k = jnp.pad(x.astype(jnp.bfloat16).T, ((0, nx_p - nx), (0, B_p - B)))

    vmem_limit = int(min(resident_bytes + batch_tile * per_col + (16 << 20),
                         vmem_cap))

    flops = 2 * B_p * (nx_p * M_p + Lm * M_p * M_p + M_p * nu_p)
    streamed_w_bytes = nb * mid_w_bytes if stream_mid_weights else mid_w_bytes
    cost = pl.CostEstimate(
        flops=int(flops),
        transcendentals=0,
        bytes_accessed=int(nx_p * B_p * 2 + nu_p * B_p * 4
                           + small_param_bytes + streamed_w_bytes))

    out_shape = jax.ShapeDtypeStruct((nu_p, B_p), jnp.float32)

    if not stream_mid_weights:
        kernel = functools.partial(_mlp_kernel_resident,
                                   num_mid_layers=Lm, leaky=leaky)
        out_k = pl.pallas_call(
            kernel,
            out_shape=out_shape,
            grid_spec=pltpu.PrefetchScalarGridSpec(
                num_scalar_prefetch=0,
                grid=(nb,),
                in_specs=[
                    # activations: tiled over batch (double-buffered by Pallas)
                    pl.BlockSpec((nx_p, batch_tile), lambda i: (0, i)),
                    # parameters: constant block index -> fetched once, resident
                    pl.BlockSpec((M_p, nx_p), lambda i: (0, 0)),
                    pl.BlockSpec((M_p, 1), lambda i: (0, 0)),
                    pl.BlockSpec((Lm_b, M_p, M_p), lambda i: (0, 0, 0)),
                    pl.BlockSpec((Lm_b, M_p, 1), lambda i: (0, 0, 0)),
                    pl.BlockSpec((nu_p, M_p), lambda i: (0, 0)),
                    pl.BlockSpec((nu_p, 1), lambda i: (0, 0)),
                ],
                out_specs=pl.BlockSpec((nu_p, batch_tile), lambda i: (0, i)),
            ),
            compiler_params=pltpu.CompilerParams(
                dimension_semantics=("parallel",),
                vmem_limit_bytes=vmem_limit),
            cost_estimate=cost,
        )(x_k, w_in, b_in, w_mid, b_mid, w_out, b_out)
    else:
        nl = max(Lm, 1)
        kernel = functools.partial(_mlp_kernel_streamed,
                                   num_mid_layers=Lm, leaky=leaky)
        out_k = pl.pallas_call(
            kernel,
            out_shape=out_shape,
            grid_spec=pltpu.PrefetchScalarGridSpec(
                num_scalar_prefetch=0,
                grid=(nb, nl),
                in_specs=[
                    pl.BlockSpec((nx_p, batch_tile), lambda i, l: (0, i)),
                    pl.BlockSpec((M_p, nx_p), lambda i, l: (0, 0)),
                    pl.BlockSpec((M_p, 1), lambda i, l: (0, 0)),
                    # one hidden layer per step, double-buffered -> DMA hidden
                    pl.BlockSpec((1, M_p, M_p), lambda i, l: (l, 0, 0)),
                    pl.BlockSpec((1, M_p, 1), lambda i, l: (l, 0, 0)),
                    pl.BlockSpec((nu_p, M_p), lambda i, l: (0, 0)),
                    pl.BlockSpec((nu_p, 1), lambda i, l: (0, 0)),
                ],
                out_specs=pl.BlockSpec((nu_p, batch_tile), lambda i, l: (0, i)),
                scratch_shapes=[pltpu.VMEM((M_p, batch_tile), jnp.float32)],
            ),
            compiler_params=pltpu.CompilerParams(
                dimension_semantics=("parallel", "arbitrary"),
                vmem_limit_bytes=vmem_limit),
            cost_estimate=cost,
        )(x_k, w_in, b_in, w_mid, b_mid, w_out, b_out)

    return out_k[:nu, :B].T


# --------------------------------------------------------------------------- #
# Parameter init (PyTorch-equivalent) and pure-JAX reference
# --------------------------------------------------------------------------- #
def init_params(key, nx, M, nu, L):
    """PyTorch-Linear-style init U(-1/sqrt(fan_in), 1/sqrt(fan_in)).
    Weights stored as (in, out) == W_pytorch.T, biases as (1, out)."""
    keys = jax.random.split(key, 2 * (L + 1))

    def lin(kw, kb, fan_in, fan_out):
        bound = 1.0 / jnp.sqrt(fan_in)
        w = jax.random.uniform(kw, (fan_in, fan_out), jnp.float32, -bound, bound)
        b = jax.random.uniform(kb, (1, fan_out), jnp.float32, -bound, bound)
        return w, b

    w_in, b_in = lin(keys[0], keys[1], nx, M)
    w_mid, b_mid = [], []
    for l in range(L - 1):
        w, b = lin(keys[2 + 2 * l], keys[3 + 2 * l], M, M)
        w_mid.append(w)
        b_mid.append(b[None])                       # (1, 1, M)
    w_out, b_out = lin(keys[2 * L], keys[2 * L + 1], M, nu)

    if L - 1 > 0:
        w_mid = jnp.stack(w_mid, axis=0)            # (L-1, M, M)
        b_mid = jnp.concatenate(b_mid, axis=0)      # (L-1, 1, M)
    else:
        w_mid = jnp.zeros((0, M, M), jnp.float32)
        b_mid = jnp.zeros((0, 1, M), jnp.float32)

    return dict(w_in=w_in, b_in=b_in, w_mid=w_mid, b_mid=b_mid,
                w_out=w_out, b_out=b_out)


def reference_forward(x, params, leaky):
    """Pure-JAX reference with the same numerics (bf16 matmul, f32 accum)."""
    def act(h):
        return jnp.where(h > 0, h, leaky * h)

    def mm(a, w):
        return jnp.dot(a.astype(jnp.bfloat16), w.astype(jnp.bfloat16),
                       preferred_element_type=jnp.float32)

    h = act(mm(x, params["w_in"]) + params["b_in"])
    for i in range(params["w_mid"].shape[0]):
        h = act(mm(h, params["w_mid"][i]) + params["b_mid"][i])
    return jnp.maximum(mm(h, params["w_out"]) + params["b_out"], 0.0)


if __name__ == "__main__":
    # Small shapes consistent with the module: nx inputs, M hidden, nu outputs,
    # L layers.  B=256 -> 2 batch tiles of 128 lanes (pipelining / v7x dual TC).
    B, nx, M, nu, L = 256, 16, 32, 8, 3
    leaky = 0.1

    key = jax.random.PRNGKey(0)
    k_x, k_p = jax.random.split(key)
    x = jax.random.normal(k_x, (B, nx), jnp.float32)
    params = init_params(k_p, nx, M, nu, L)

    ref = reference_forward(x, params, leaky)

    # Default path: resident bf16 weights.
    out = jax.block_until_ready(
        custom_quantized_net_forward(x, params, leaky=leaky))
    assert out.shape == (B, nu)
    assert jnp.allclose(out, ref, atol=1e-4, rtol=1e-4), "mismatch (resident)"

    # Also exercise the streamed-mid-weights scaling path (selected
    # automatically once Lm*M_p^2 weights no longer fit v7x VMEM comfortably).
    out_s = jax.block_until_ready(
        custom_quantized_net_forward(x, params, leaky=leaky,
                                     stream_mid_weights=True))
    assert jnp.allclose(out_s, ref, atol=1e-4, rtol=1e-4), "mismatch (streamed)"

    print("KERNEL_OK")
</pallas_src>

<mosaic_0001>
module attributes {stable_mosaic.version = 11 : i64} {
  func.func @_mlp_kernel_resident(%arg0: i32, %arg1: memref<16x128xbf16, #tpu.memory_space<vmem>>, %arg2: memref<32x16xbf16, #tpu.memory_space<vmem>>, %arg3: memref<32x1xf32, #tpu.memory_space<vmem>>, %arg4: memref<2x32x32xbf16, #tpu.memory_space<vmem>>, %arg5: memref<2x32x1xf32, #tpu.memory_space<vmem>>, %arg6: memref<8x32xbf16, #tpu.memory_space<vmem>>, %arg7: memref<8x1xf32, #tpu.memory_space<vmem>>, %arg8: memref<8x128xf32, #tpu.memory_space<vmem>>) attributes {dimension_semantics = [#tpu.dimension_semantics<parallel>], iteration_bounds = array<i64: 2>, scalar_prefetch = 0 : i64, scratch_operands = 0 : i64, tpu.core_type = #tpu.core_type<tc>, window_params = [{transform_indices = @transform_0, window_bounds = array<i64: 16, 128>}, {pipeline_mode = #tpu.pipeline_mode<synchronous>, transform_indices = @transform_1, window_bounds = array<i64: 32, 16>}, {pipeline_mode = #tpu.pipeline_mode<synchronous>, transform_indices = @transform_2, window_bounds = array<i64: 32, 1>}, {pipeline_mode = #tpu.pipeline_mode<synchronous>, transform_indices = @transform_3, window_bounds = array<i64: 2, 32, 32>}, {pipeline_mode = #tpu.pipeline_mode<synchronous>, transform_indices = @transform_4, window_bounds = array<i64: 2, 32, 1>}, {pipeline_mode = #tpu.pipeline_mode<synchronous>, transform_indices = @transform_5, window_bounds = array<i64: 8, 32>}, {pipeline_mode = #tpu.pipeline_mode<synchronous>, transform_indices = @transform_6, window_bounds = array<i64: 8, 1>}, {transform_indices = @transform_7, window_bounds = array<i64: 8, 128>}]} {
    %c0 = arith.constant 0 : index
    %c0_0 = arith.constant 0 : index
    %0 = vector.load %arg2[%c0, %c0_0] : memref<32x16xbf16, #tpu.memory_space<vmem>>, vector<32x16xbf16>
    %c0_1 = arith.constant 0 : index
    %c0_2 = arith.constant 0 : index
    %1 = vector.load %arg1[%c0_1, %c0_2] : memref<16x128xbf16, #tpu.memory_space<vmem>>, vector<16x128xbf16>
    %cst = arith.constant dense<0.000000e+00> : vector<32x128xf32>
    %2 = tpu.matmul %0, %1, %cst {dimension_numbers = #tpu.dot_dimension_numbers<[1], [0], [0], [1], [0, 0, 1, 1], [], []>} : vector<32x16xbf16>, vector<16x128xbf16>, vector<32x128xf32> -> vector<32x128xf32>
    %c0_3 = arith.constant 0 : index
    %c0_4 = arith.constant 0 : index
    %3 = vector.load %arg3[%c0_3, %c0_4] : memref<32x1xf32, #tpu.memory_space<vmem>>, vector<32x1xf32>
    %4 = vector.broadcast %3 : vector<32x1xf32> to vector<32x128xf32>
    %5 = arith.addf %2, %4 : vector<32x128xf32>
    %cst_5 = arith.constant 1.000000e-01 : f32
    %6 = vector.broadcast %cst_5 : f32 to vector<32x128xf32>
    %7 = arith.mulf %6, %5 : vector<32x128xf32>
    %8 = arith.maximumf %5, %7 : vector<32x128xf32>
    %c0_6 = arith.constant 0 : index
    %c0_7 = arith.constant 0 : index
    %c0_8 = arith.constant 0 : index
    %9 = vector.load %arg4[%c0_6, %c0_7, %c0_8] : memref<2x32x32xbf16, #tpu.memory_space<vmem>>, vector<1x32x32xbf16>
    %10 = vector.shape_cast %9 : vector<1x32x32xbf16> to vector<32x32xbf16>
    %11 = arith.truncf %8 : vector<32x128xf32> to vector<32x128xbf16>
    %cst_9 = arith.constant dense<0.000000e+00> : vector<32x128xf32>
    %12 = tpu.matmul %10, %11, %cst_9 {dimension_numbers = #tpu.dot_dimension_numbers<[1], [0], [0], [1], [0, 0, 1, 1], [], []>} : vector<32x32xbf16>, vector<32x128xbf16>, vector<32x128xf32> -> vector<32x128xf32>
    %c0_10 = arith.constant 0 : index
    %c0_11 = arith.constant 0 : index
    %c0_12 = arith.constant 0 : index
    %13 = vector.load %arg5[%c0_10, %c0_11, %c0_12] : memref<2x32x1xf32, #tpu.memory_space<vmem>>, vector<1x32x1xf32>
    %14 = vector.shape_cast %13 : vector<1x32x1xf32> to vector<32x1xf32>
    %15 = vector.broadcast %14 : vector<32x1xf32> to vector<32x128xf32>
    %16 = arith.addf %12, %15 : vector<32x128xf32>
    %cst_13 = arith.constant 1.000000e-01 : f32
    %17 = vector.broadcast %cst_13 : f32 to vector<32x128xf32>
    %18 = arith.mulf %17, %16 : vector<32x128xf32>
    %19 = arith.maximumf %16, %18 : vector<32x128xf32>
    %c1 = arith.constant 1 : index
    %c0_14 = arith.constant 0 : index
    %c0_15 = arith.constant 0 : index
    %20 = vector.load %arg4[%c1, %c0_14, %c0_15] : memref<2x32x32xbf16, #tpu.memory_space<vmem>>, vector<1x32x32xbf16>
    %21 = vector.shape_cast %20 : vector<1x32x32xbf16> to vector<32x32xbf16>
    %22 = arith.truncf %19 : vector<32x128xf32> to vector<32x128xbf16>
    %cst_16 = arith.constant dense<0.000000e+00> : vector<32x128xf32>
    %23 = tpu.matmul %21, %22, %cst_16 {dimension_numbers = #tpu.dot_dimension_numbers<[1], [0], [0], [1], [0, 0, 1, 1], [], []>} : vector<32x32xbf16>, vector<32x128xbf16>, vector<32x128xf32> -> vector<32x128xf32>
    %c1_17 = arith.constant 1 : index
    %c0_18 = arith.constant 0 : index
    %c0_19 = arith.constant 0 : index
    %24 = vector.load %arg5[%c1_17, %c0_18, %c0_19] : memref<2x32x1xf32, #tpu.memory_space<vmem>>, vector<1x32x1xf32>
    %25 = vector.shape_cast %24 : vector<1x32x1xf32> to vector<32x1xf32>
    %26 = vector.broadcast %25 : vector<32x1xf32> to vector<32x128xf32>
    %27 = arith.addf %23, %26 : vector<32x128xf32>
    %cst_20 = arith.constant 1.000000e-01 : f32
    %28 = vector.broadcast %cst_20 : f32 to vector<32x128xf32>
    %29 = arith.mulf %28, %27 : vector<32x128xf32>
    %30 = arith.maximumf %27, %29 : vector<32x128xf32>
    %c0_21 = arith.constant 0 : index
    %c0_22 = arith.constant 0 : index
    %31 = vector.load %arg6[%c0_21, %c0_22] : memref<8x32xbf16, #tpu.memory_space<vmem>>, vector<8x32xbf16>
    %32 = arith.truncf %30 : vector<32x128xf32> to vector<32x128xbf16>
    %cst_23 = arith.constant dense<0.000000e+00> : vector<8x128xf32>
    %33 = tpu.matmul %31, %32, %cst_23 {dimension_numbers = #tpu.dot_dimension_numbers<[1], [0], [0], [1], [0, 0, 1, 1], [], []>} : vector<8x32xbf16>, vector<32x128xbf16>, vector<8x128xf32> -> vector<8x128xf32>
    %c0_24 = arith.constant 0 : index
    %c0_25 = arith.constant 0 : index
    %34 = vector.load %arg7[%c0_24, %c0_25] : memref<8x1xf32, #tpu.memory_space<vmem>>, vector<8x1xf32>
    %35 = vector.broadcast %34 : vector<8x1xf32> to vector<8x128xf32>
    %36 = arith.addf %33, %35 : vector<8x128xf32>
    %cst_26 = arith.constant 0.000000e+00 : f32
    %37 = vector.broadcast %cst_26 : f32 to vector<8x128xf32>
    %38 = arith.maximumf %36, %37 : vector<8x128xf32>
    %c0_27 = arith.constant 0 : index
    %c0_28 = arith.constant 0 : index
    %39 = vector.load %arg8[%c0_27, %c0_28] : memref<8x128xf32, #tpu.memory_space<vmem>>, vector<8x128xf32>
    tpu.vector_store %arg8[%c0_27, %c0_28], %38 {strides = array<i32>} : memref<8x128xf32, #tpu.memory_space<vmem>>, vector<8x128xf32>,
    return
  }
  func.func @transform_0(%arg0: i32) -> (i32, i32) {
    %c0_i32 = arith.constant 0 : i32
    %c0_i32_0 = arith.constant 0 : i32
    return %c0_i32, %arg0 : i32, i32
  }
  func.func @transform_1(%arg0: i32) -> (i32, i32) {
    %c0_i32 = arith.constant 0 : i32
    %c0_i32_0 = arith.constant 0 : i32
    %c0_i32_1 = arith.constant 0 : i32
    return %c0_i32, %c0_i32_0 : i32, i32
  }
  func.func @transform_2(%arg0: i32) -> (i32, i32) {
    %c0_i32 = arith.constant 0 : i32
    %c0_i32_0 = arith.constant 0 : i32
    %c0_i32_1 = arith.constant 0 : i32
    return %c0_i32, %c0_i32_0 : i32, i32
  }
  func.func @transform_3(%arg0: i32) -> (i32, i32, i32) {
    %c0_i32 = arith.constant 0 : i32
    %c0_i32_0 = arith.constant 0 : i32
    %c0_i32_1 = arith.constant 0 : i32
    %c0_i32_2 = arith.constant 0 : i32
    return %c0_i32, %c0_i32_0, %c0_i32_1 : i32, i32, i32
  }
  func.func @transform_4(%arg0: i32) -> (i32, i32, i32) {
    %c0_i32 = arith.constant 0 : i32
    %c0_i32_0 = arith.constant 0 : i32
    %c0_i32_1 = arith.constant 0 : i32
    %c0_i32_2 = arith.constant 0 : i32
    return %c0_i32, %c0_i32_0, %c0_i32_1 : i32, i32, i32
  }
  func.func @transform_5(%arg0: i32) -> (i32, i32) {
    %c0_i32 = arith.constant 0 : i32
    %c0_i32_0 = arith.constant 0 : i32
    %c0_i32_1 = arith.constant 0 : i32
    return %c0_i32, %c0_i32_0 : i32, i32
  }
  func.func @transform_6(%arg0: i32) -> (i32, i32) {
    %c0_i32 = arith.constant 0 : i32
    %c0_i32_0 = arith.constant 0 : i32
    %c0_i32_1 = arith.constant 0 : i32
    return %c0_i32, %c0_i32_0 : i32, i32
  }
  func.func @transform_7(%arg0: i32) -> (i32, i32) {
    %c0_i32 = arith.constant 0 : i32
    %c0_i32_0 = arith.constant 0 : i32
    return %c0_i32, %arg0 : i32, i32
  }
}

</mosaic_0001>

<llo_original>
// kernel: tpu_custom_call.1
$region0: #{tpu_custom_call.1}
  #allocation0 [shape = 'u32[]', space=smem, size = 0x4, offset = 0x4, fixed_abs, tag = 'smem constant byte address 0x4 - core index']
  #allocation1 [shape = 'u32[144,128]{1,0:T(1,128)}', space=vmem, size = 0x12000, scoped, tag = 'internal scratch']
  %s0 = inlined_call_operand.vmem [shape: bf16[16,256], index: 0, kind: input, shape index: {}]
  %s1 = inlined_call_operand.vmem [shape: bf16[32,16], index: 1, kind: input, shape index: {}]
  %s2 = inlined_call_operand.vmem [shape: f32[32,1], index: 2, kind: input, shape index: {}]
  %s3 = inlined_call_operand.vmem [shape: bf16[2,32,32], index: 3, kind: input, shape index: {}]
  %s4 = inlined_call_operand.vmem [shape: f32[2,32,1], index: 4, kind: input, shape index: {}]
  %s5 = inlined_call_operand.vmem [shape: bf16[8,32], index: 5, kind: input, shape index: {}]
  %s6 = inlined_call_operand.vmem [shape: f32[8,1], index: 6, kind: input, shape index: {}]
  %s7 = inlined_call_operand.hbm [shape: f32[8,256], index: 7, kind: output, shape index: {}]
  %s8 = sld [smem:[#allocation0]]
  $region102: #{tpu_custom_call.1} parent=0
    _
  %s10 = ssub.s32 1, %s8
  %s11 = scalar_select 0, %s10, %s8
  $region1: #{tpu_custom_call.1} parent=0
    #allocation2 [shape = 'u8[8192]{0}', space=vmem, size = 0x2000, scoped, tag = 'input window, operand 0']
    #allocation3 [shape = 'u8[8192]{0}', space=vmem, size = 0x2000, scoped, tag = 'output window, operand 0']
    #allocation4 [shape = 's32[2]{0}', space=sflag, size = 0x8, scoped, tag = 'scoped memory for tpu_custom_call.1']
    %12 = vsyncpa [#allocation4], 0
    %s13 = scalar_lea.sflag [#allocation4], 1
    %14 = vsyncpa %s13, 0
    loop: start=0, step=1, limit=4
    $region2: #{tpu_custom_call.1} parent=1 // loop_pre_header
      _
    $region3: #{tpu_custom_call.1} parent=1 // loop_header
      %s16 = sphi 0, %s20
      %p17 = scmp.ge.s32.totalorder %s16, 4
      %s26 = sphi 0, %s28
      %s29 = sphi 0, %s26
      %s30 = sphi 0, %s29
      %s46 = sphi 0, %s30
      %s50 = sphi 0, %s50
      %s52 = sphi 0, %s50
      %s53 = sphi 0, %s52
      %s67 = sphi 0, %s53
      %s71 = sphi 0, %s71
      %s73 = sphi 0, %s71
      %s74 = sphi 0, %s73
      %s88 = sphi 0, %s74
      %s92 = sphi 0, %s92
      %s94 = sphi 0, %s92
      %s95 = sphi 0, %s94
      %s109 = sphi 0, %s95
      %s113 = sphi 0, %s113
      %s115 = sphi 0, %s113
      %s116 = sphi 0, %s115
      %s130 = sphi 0, %s116
      %s134 = sphi 0, %s134
      %s136 = sphi 0, %s134
      %s137 = sphi 0, %s136
      %s151 = sphi 0, %s137
      %s155 = sphi 0, %s155
      %s157 = sphi 0, %s155
      %s158 = sphi 0, %s157
      %s172 = sphi 0, %s158
      %s178 = sphi 0, %s180
      %s181 = sphi 0, %s178
      %s182 = sphi 0, %s181
      %s198 = sphi 0, %s182
    $region4: #{tpu_custom_call.1} parent=1 // loop_header_branch
      %19 = sbr.rel (%p17) target = $region8
    $region5: #{tpu_custom_call.1} parent=1 // loop_body
      %s21 = ssub.s32 %s16, 1
      %s22 = ssub.s32 %s16, 2
      %s23 = sadd.s32 %s16, 1
      %s24 = ssub.s32 %s16, %s23
      %p25 = scmp.eq.s32.totalorder %s24, 0
      %s27 = sadd.s32 %s26, 1
      %s28 = scalar_select %p25, %s26, %s27
      %p31 = pneg %p25
      %p32 = scmp.eq.s32.totalorder %s16, 1
      %p33 = por %p31, %p32
      %p34 = scmp.ne.s32.totalorder %s26, %s29
      %p35 = scmp.eq.s32.totalorder %s16, 0
      %p36 = por %p34, %p35
      %p37 = scmp.ne.s32.totalorder %s26, %s29
      %p38 = scmp.eq.s32.totalorder %s21, 1
      %p39 = por %p37, %p38
      %p40 = scmp.ne.s32.totalorder %s29, %s30
      %p41 = scmp.eq.s32.totalorder %s21, 0
      %p42 = por %p40, %p41
      %p43 = scmp.ne.s32.totalorder %s29, %s30
      %p44 = scmp.eq.s32.totalorder %s22, 1
      %p45 = por %p43, %p44
      %p47 = scmp.ne.s32.totalorder %s30, %s46
      %p48 = scmp.eq.s32.totalorder %s22, 0
      %p49 = por %p47, %p48
      %s51 = sadd.s32 %s50, 1
      %p54 = scmp.eq.s32.totalorder %s16, 1
      %p55 = scmp.ne.s32.totalorder %s50, %s52
      %p56 = scmp.eq.s32.totalorder %s16, 0
      %p57 = por %p55, %p56
      %p58 = scmp.ne.s32.totalorder %s50, %s52
      %p59 = scmp.eq.s32.totalorder %s21, 1
      %p60 = por %p58, %p59
      %p61 = scmp.ne.s32.totalorder %s52, %s53
      %p62 = scmp.eq.s32.totalorder %s21, 0
      %p63 = por %p61, %p62
      %p64 = scmp.ne.s32.totalorder %s52, %s53
      %p65 = scmp.eq.s32.totalorder %s22, 1
      %p66 = por %p64, %p65
      %p68 = scmp.ne.s32.totalorder %s53, %s67
      %p69 = scmp.eq.s32.totalorder %s22, 0
      %p70 = por %p68, %p69
      %s72 = sadd.s32 %s71, 1
      %p75 = scmp.eq.s32.totalorder %s16, 1
      %p76 = scmp.ne.s32.totalorder %s71, %s73
      %p77 = scmp.eq.s32.totalorder %s16, 0
      %p78 = por %p76, %p77
      %p79 = scmp.ne.s32.totalorder %s71, %s73
      %p80 = scmp.eq.s32.totalorder %s21, 1
      %p81 = por %p79, %p80
      %p82 = scmp.ne.s32.totalorder %s73, %s74
      %p83 = scmp.eq.s32.totalorder %s21, 0
      %p84 = por %p82, %p83
      %p85 = scmp.ne.s32.totalorder %s73, %s74
      %p86 = scmp.eq.s32.totalorder %s22, 1
      %p87 = por %p85, %p86
      %p89 = scmp.ne.s32.totalorder %s74, %s88
      %p90 = scmp.eq.s32.totalorder %s22, 0
      %p91 = por %p89, %p90
      %s93 = sadd.s32 %s92, 1
      %p96 = scmp.eq.s32.totalorder %s16, 1
      %p97 = scmp.ne.s32.totalorder %s92, %s94
      %p98 = scmp.eq.s32.totalorder %s16, 0
      %p99 = por %p97, %p98
      %p100 = scmp.ne.s32.totalorder %s92, %s94
      %p101 = scmp.eq.s32.totalorder %s21, 1
      %p102 = por %p100, %p101
      %p103 = scmp.ne.s32.totalorder %s94, %s95
      %p104 = scmp.eq.s32.totalorder %s21, 0
      %p105 = por %p103, %p104
      %p106 = scmp.ne.s32.totalorder %s94, %s95
      %p107 = scmp.eq.s32.totalorder %s22, 1
      %p108 = por %p106, %p107
      %p110 = scmp.ne.s32.totalorder %s95, %s109
      %p111 = scmp.eq.s32.totalorder %s22, 0
      %p112 = por %p110, %p111
      %s114 = sadd.s32 %s113, 1
      %p117 = scmp.eq.s32.totalorder %s16, 1
      %p118 = scmp.ne.s32.totalorder %s113, %s115
      %p119 = scmp.eq.s32.totalorder %s16, 0
      %p120 = por %p118, %p119
      %p121 = scmp.ne.s32.totalorder %s113, %s115
      %p122 = scmp.eq.s32.totalorder %s21, 1
      %p123 = por %p121, %p122
      %p124 = scmp.ne.s32.totalorder %s115, %s116
      %p125 = scmp.eq.s32.totalorder %s21, 0
      %p126 = por %p124, %p125
      %p127 = scmp.ne.s32.totalorder %s115, %s116
      %p128 = scmp.eq.s32.totalorder %s22, 1
      %p129 = por %p127, %p128
      %p131 = scmp.ne.s32.totalorder %s116, %s130
      %p132 = scmp.eq.s32.totalorder %s22, 0
      %p133 = por %p131, %p132
      %s135 = sadd.s32 %s134, 1
      %p138 = scmp.eq.s32.totalorder %s16, 1
      %p139 = scmp.ne.s32.totalorder %s134, %s136
      %p140 = scmp.eq.s32.totalorder %s16, 0
      %p141 = por %p139, %p140
      %p142 = scmp.ne.s32.totalorder %s134, %s136
      %p143 = scmp.eq.s32.totalorder %s21, 1
      %p144 = por %p142, %p143
      %p145 = scmp.ne.s32.totalorder %s136, %s137
      %p146 = scmp.eq.s32.totalorder %s21, 0
      %p147 = por %p145, %p146
      %p148 = scmp.ne.s32.totalorder %s136, %s137
      %p149 = scmp.eq.s32.totalorder %s22, 1
      %p150 = por %p148, %p149
      %p152 = scmp.ne.s32.totalorder %s137, %s151
      %p153 = scmp.eq.s32.totalorder %s22, 0
      %p154 = por %p152, %p153
      %s156 = sadd.s32 %s155, 1
      %p159 = scmp.eq.s32.totalorder %s16, 1
      %p160 = scmp.ne.s32.totalorder %s155, %s157
      %p161 = scmp.eq.s32.totalorder %s16, 0
      %p162 = por %p160, %p161
      %p163 = scmp.ne.s32.totalorder %s155, %s157
      %p164 = scmp.eq.s32.totalorder %s21, 1
      %p165 = por %p163, %p164
      %p166 = scmp.ne.s32.totalorder %s157, %s158
      %p167 = scmp.eq.s32.totalorder %s21, 0
      %p168 = por %p166, %p167
      %p169 = scmp.ne.s32.totalorder %s157, %s158
      %p170 = scmp.eq.s32.totalorder %s22, 1
      %p171 = por %p169, %p170
      %p173 = scmp.ne.s32.totalorder %s158, %s172
      %p174 = scmp.eq.s32.totalorder %s22, 0
      %p175 = por %p173, %p174
      %s176 = ssub.s32 %s16, %s23
      %p177 = scmp.eq.s32.totalorder %s176, 0
      %s179 = sadd.s32 %s178, 1
      %s180 = scalar_select %p177, %s178, %s179
      %p183 = pneg %p177
      %p184 = scmp.eq.s32.totalorder %s16, 1
      %p185 = por %p183, %p184
      %p186 = scmp.ne.s32.totalorder %s178, %s181
      %p187 = scmp.eq.s32.totalorder %s16, 0
      %p188 = por %p186, %p187
      %p189 = scmp.ne.s32.totalorder %s178, %s181
      %p190 = scmp.eq.s32.totalorder %s21, 1
      %p191 = por %p189, %p190
      %p192 = scmp.ne.s32.totalorder %s181, %s182
      %p193 = scmp.eq.s32.totalorder %s21, 0
      %p194 = por %p192, %p193
      %p195 = scmp.ne.s32.totalorder %s181, %s182
      %p196 = scmp.eq.s32.totalorder %s22, 1
      %p197 = por %p195, %p196
      %p199 = scmp.ne.s32.totalorder %s182, %s198
      %p200 = scmp.eq.s32.totalorder %s22, 0
      %p201 = por %p199, %p200
      %p202 = scmp.le.s32.totalorder 1, %s16
      %p203 = scmp.lt.s32.totalorder %s16, 3
      %p204 = pnand %p202, %p203
      %p205 = pneg %p204
      // Predicated region
      $region9: #{tpu_custom_call.1} parent=5 // pred_check
        _
      $region10: #{tpu_custom_call.1} parent=5 // pred_check_branch
        %207 = sbr.rel (%p204) target = $region12
      $region11: #{tpu_custom_call.1} parent=5 // pred_region
        %s208 = ssub.s32 %s16, 1
        // Predicated region
        $region13: #{tpu_custom_call.1} parent=11 // pred_check
          %p209 = pneg %p63
        $region14: #{tpu_custom_call.1} parent=11 // pred_check_branch
          %211 = sbr.rel (%p209) target = $region16
        $region15: #{tpu_custom_call.1} parent=11 // pred_region
          _
        $region16: #{tpu_custom_call.1} parent=11 // pred_fallthru
          _
        // Predicated region
        $region17: #{tpu_custom_call.1} parent=11 // pred_check
          %p212 = pneg %p84
        $region18: #{tpu_custom_call.1} parent=11 // pred_check_branch
          %214 = sbr.rel (%p212) target = $region20
        $region19: #{tpu_custom_call.1} parent=11 // pred_region
          _
        $region20: #{tpu_custom_call.1} parent=11 // pred_fallthru
          _
        // Predicated region
        $region21: #{tpu_custom_call.1} parent=11 // pred_check
          %p215 = pneg %p105
        $region22: #{tpu_custom_call.1} parent=11 // pred_check_branch
          %217 = sbr.rel (%p215) target = $region24
        $region23: #{tpu_custom_call.1} parent=11 // pred_region
          _
        $region24: #{tpu_custom_call.1} parent=11 // pred_fallthru
          _
        // Predicated region
        $region25: #{tpu_custom_call.1} parent=11 // pred_check
          %p218 = pneg %p126
        $region26: #{tpu_custom_call.1} parent=11 // pred_check_branch
          %220 = sbr.rel (%p218) target = $region28
        $region27: #{tpu_custom_call.1} parent=11 // pred_region
          _
        $region28: #{tpu_custom_call.1} parent=11 // pred_fallthru
          _
        // Predicated region
        $region29: #{tpu_custom_call.1} parent=11 // pred_check
          %p221 = pneg %p147
        $region30: #{tpu_custom_call.1} parent=11 // pred_check_branch
          %223 = sbr.rel (%p221) target = $region32
        $region31: #{tpu_custom_call.1} parent=11 // pred_region
          _
        $region32: #{tpu_custom_call.1} parent=11 // pred_fallthru
          _
        // Predicated region
        $region33: #{tpu_custom_call.1} parent=11 // pred_check
          %p224 = pneg %p168
        $region34: #{tpu_custom_call.1} parent=11 // pred_check_branch
          %226 = sbr.rel (%p224) target = $region36
        $region35: #{tpu_custom_call.1} parent=11 // pred_region
          _
        $region36: #{tpu_custom_call.1} parent=11 // pred_fallthru
          _
      $region12: #{tpu_custom_call.1} parent=5 // pred_fallthru
        _
      %p227 = scmp.lt.s32.totalorder %s16, 2
      // Predicated region
      $region37: #{tpu_custom_call.1} parent=5 // pred_check
        %p228 = pneg %p227
      $region38: #{tpu_custom_call.1} parent=5 // pred_check_branch
        %230 = sbr.rel (%p228) target = $region40
      $region39: #{tpu_custom_call.1} parent=5 // pred_region
        // Predicated region
        $region41: #{tpu_custom_call.1} parent=39 // pred_check
          %p231 = pneg %p36
        $region42: #{tpu_custom_call.1} parent=39 // pred_check_branch
          %233 = sbr.rel (%p231) target = $region44
        $region43: #{tpu_custom_call.1} parent=39 // pred_region
          %s234 = sand.u32 %s26, 1
          %s235 = sand.u32 %s26, 1
          %s236 = smul.addr %s235, 8
          %s237 = scalar_lea.vmem [#allocation2], %s236
          %s238 = smul.addr %s16, 4
          %s239 = scalar_lea.vmem %s0, %s238
          // Predicated region
          $region45: #{tpu_custom_call.1} parent=43 // pred_check
            _
          $region46: #{tpu_custom_call.1} parent=43 // pred_check_branch
            %241 = sbr.rel (0) target = $region48
          $region47: #{tpu_custom_call.1} parent=43 // pred_region
            // Predicated region
            $region49: #{tpu_custom_call.1} parent=47 // pred_check
              _
            $region50: #{tpu_custom_call.1} parent=47 // pred_check_branch
              %243 = sbr.rel target = $region52
            $region51: #{tpu_custom_call.1} parent=47 // pred_region
              // Predicated region
              $region64: #{tpu_custom_call.1} parent=51 // pred_check
                _
              $region65: #{tpu_custom_call.1} parent=51 // pred_check_branch
                %260 = sbr.rel (0) target = $region67
              $region66: #{tpu_custom_call.1} parent=51 // pred_region
                loop: start=0, step=1, limit=1
                $region68: #{tpu_custom_call.1} parent=66 // loop_pre_header
                  _
                $region69: #{tpu_custom_call.1} parent=66 // loop_header
                  %s262 = sphi 0, %s266
                  %p263 = scmp.ge.s32.totalorder %s262, 1
                  %s267 = sphi %s239, %s239
                  %s268 = sphi %s237, %s237
                $region70: #{tpu_custom_call.1} parent=66 // loop_header_branch
                  %265 = sbr.rel (%p263) target = $region74
                $region71: #{tpu_custom_call.1} parent=66 // loop_body
                  _
                $region72: #{tpu_custom_call.1} parent=66 // loop_footer
                  %s266 = sadd.s32 1, %s262
                $region73: #{tpu_custom_call.1} parent=66 // loop_footer_branch
                  %261 = sbr.rel target = $region69
                $region74: #{tpu_custom_call.1} parent=66 // loop_exit
                  _
                loop: start=0, step=1, limit=1
                $region75: #{tpu_custom_call.1} parent=66 // loop_pre_header
                  _
                $region76: #{tpu_custom_call.1} parent=66 // loop_header
                  %s271 = sphi 0, %s275
                  %p272 = scmp.ge.s32.totalorder %s271, 1
                  %s276 = sphi %s239, %s239
                  %s277 = sphi %s237, %s237
                $region77: #{tpu_custom_call.1} parent=66 // loop_header_branch
                  %274 = sbr.rel (%p272) target = $region81
                $region78: #{tpu_custom_call.1} parent=66 // loop_body
                  %v278 = vld [vmem:[%s276] sm:$0xf]
                  %279 = vst [vmem:[%s277] sm:$0xf] %v278
                  %v280 = vld [vmem:[%s276 + $0x8] sm:$0xf]
                  %281 = vst [vmem:[%s277 + $0x4] sm:$0xf] %v280
                $region79: #{tpu_custom_call.1} parent=66 // loop_footer
                  %s275 = sadd.s32 1, %s271
                $region80: #{tpu_custom_call.1} parent=66 // loop_footer_branch
                  %270 = sbr.rel target = $region76
                $region81: #{tpu_custom_call.1} parent=66 // loop_exit
                  _
              $region67: #{tpu_custom_call.1} parent=51 // pred_fallthru
                _
            $region52: #{tpu_custom_call.1} parent=47 // pred_fallthru
              _
            // Predicated region
            $region53: #{tpu_custom_call.1} parent=47 // pred_check
              _
            $region54: #{tpu_custom_call.1} parent=47 // pred_check_branch
              %245 = sbr.rel (0) target = $region56
            $region55: #{tpu_custom_call.1} parent=47 // pred_region
              loop: start=0, step=1, limit=1
              $region57: #{tpu_custom_call.1} parent=55 // loop_pre_header
                _
              $region58: #{tpu_custom_call.1} parent=55 // loop_header
                %s248 = sphi 0, %s252
                %p249 = scmp.ge.s32.totalorder %s248, 1
                %s253 = sphi %s239, %s239
                %s254 = sphi %s237, %s237
              $region59: #{tpu_custom_call.1} parent=55 // loop_header_branch
                %251 = sbr.rel (%p249) target = $region63
              $region60: #{tpu_custom_call.1} parent=55 // loop_body
                %v255 = vld [vmem:[%s253] sm:$0xf]
                %256 = vst [vmem:[%s254] sm:$0xf] %v255
                %v257 = vld [vmem:[%s253 + $0x8] sm:$0xf]
                %258 = vst [vmem:[%s254 + $0x4] sm:$0xf] %v257
              $region61: #{tpu_custom_call.1} parent=55 // loop_footer
                %s252 = sadd.s32 1, %s248
              $region62: #{tpu_custom_call.1} parent=55 // loop_footer_branch
                %247 = sbr.rel target = $region58
              $region63: #{tpu_custom_call.1} parent=55 // loop_exit
                _
            $region56: #{tpu_custom_call.1} parent=47 // pred_fallthru
              _
          $region48: #{tpu_custom_call.1} parent=43 // pred_fallthru
            _
          %282 = vnop
        $region44: #{tpu_custom_call.1} parent=39 // pred_fallthru
          _
      $region40: #{tpu_custom_call.1} parent=5 // pred_fallthru
        _
      %p283 = scmp.le.s32.totalorder 1, %s16
      %p284 = scmp.lt.s32.totalorder %s16, 3
      %p285 = pnand %p283, %p284
      %p286 = pneg %p285
      // Predicated region
      $region82: #{tpu_custom_call.1} parent=5 // pred_check
        _
      $region83: #{tpu_custom_call.1} parent=5 // pred_check_branch
        %288 = sbr.rel (%p285) target = $region85
      $region84: #{tpu_custom_call.1} parent=5 // pred_region
        %s289 = ssub.s32 %s16, 1
        %s290 = sand.u32 %s29, 1
        %s291 = sand.u32 %s29, 1
        %s292 = smul.addr %s291, 8
        %s293 = scalar_lea.vmem [#allocation2], %s292
        // Predicated region
        $region86: #{tpu_custom_call.1} parent=84 // pred_check
          %p294 = pneg %p42
        $region87: #{tpu_custom_call.1} parent=84 // pred_check_branch
          %296 = sbr.rel (%p294) target = $region89
        $region88: #{tpu_custom_call.1} parent=84 // pred_region
          _
        $region89: #{tpu_custom_call.1} parent=84 // pred_fallthru
          _
        %s297 = sand.u32 %s29, 1
        %s298 = sand.u32 %s29, 1
        %s299 = smul.addr %s298, 8
        %s300 = scalar_lea.vmem [#allocation2], %s299
        %p301 = pneg %p42
        %p302 = pneg %p39
        %p303 = pneg %p63
        %p304 = pneg %p60
        %p305 = pneg %p84
        %p306 = pneg %p81
        %p307 = pneg %p105
        %p308 = pneg %p102
        %p309 = pneg %p126
        %p310 = pneg %p123
        %p311 = pneg %p147
        %p312 = pneg %p144
        %p313 = pneg %p168
        %p314 = pneg %p165
        %p315 = pneg %p194
        %p316 = pneg %p191
        %s317 = sand.u32 %s181, 1
        %s318 = scalar_lea.sflag [#allocation4], %s317
        %s319 = sand.u32 %s181, 1
        %s320 = smul.addr %s319, 8
        %s321 = scalar_lea.vmem [#allocation3], %s320
        %v323 = vld [vmem:[%s1] sm:$0xf]
        %v324 = vld [vmem:[%s1 + $0x4] sm:$0xf]
        %v325 = vld [vmem:[%s1 + $0x8] sm:$0xf]
        %v326 = vld [vmem:[%s1 + $0xc] sm:$0xf]
        %v327 = vld [vmem:[%s293] sm:$0xf]
        %v328 = vld [vmem:[%s293 + $0x4] sm:$0xf]
        %v329 = vld [vmem:[%s2] sm:$0xff]
        %v330 = vld [vmem:[%s2 + $0x8] sm:$0xff]
        %v331 = vld [vmem:[%s2 + $0x10] sm:$0xff]
        %v332 = vld [vmem:[%s2 + $0x18] sm:$0xff]
        %334 = vset.pattern.permute.xlu0 0
        %335 = vperm.xlu0 %334, %v329
        %v336 = vpop.permute.xlu0 %335
        %339 = vset.pattern.permute.xlu0 0
        %340 = vperm.xlu0 %339, %v330
        %v341 = vpop.permute.xlu0 %340
        %344 = vset.pattern.permute.xlu0 0
        %345 = vperm.xlu0 %344, %v331
        %v346 = vpop.permute.xlu0 %345
        %349 = vset.pattern.permute.xlu0 0
        %350 = vperm.xlu0 %349, %v332
        %v351 = vpop.permute.xlu0 %350
        %v357 = vunpack.c.l.b16 %v323
        %v358 = vunpack.c.l.b16 %v324
        %v359 = vunpack.c.l.b16 %v325
        %v360 = vunpack.c.l.b16 %v326
        %v361 = vpack.c.b16 %v358, %v357
        %v362 = vpack.c.b16 %v360, %v359
        %v365 = vunpack.c.l.b16 %v327
        %v366 = vunpack.c.l.b16 %v328
        %v367 = vpack.c.b16 %v366, %v365
        %vm369 = vcmask 130048
        %v371 = vsel %vm369, %v361, 0
        %v374 = vsel %vm369, %v362, 0
        %376 = vmatprep.subr.bf16.mxu0 0
        %377 = vmatpush1.bf16.msra.mxu0 %v367
        %378 = vmatprep.subr.bf16.mxu0 0
        %379 = vmatpush1.bf16.msra.mxu0 0
        %380 = vmatprep.subr.bf16.mxu0 0
        %381 = vmatpush1.bf16.msra.mxu0 0
        %382 = vmatprep.subr.bf16.mxu0 0
        %383 = vmatpush1.bf16.msra.mxu0 0
        %384 = vmatprep.subr.bf16.mxu0 0
        %385 = vmatpush1.bf16.msra.mxu0 0
        %386 = vmatprep.subr.bf16.mxu0 0
        %387 = vmatpush1.bf16.msra.mxu0 0
        %388 = vmatprep.subr.bf16.mxu0 0
        %389 = vmatpush1.bf16.msra.mxu0 0
        %390 = vmatprep.subr.bf16.mxu0 0
        %391 = vmatpush1.bf16.msra.mxu0 0
        %392 = vmatprep.subr.bf16.mxu0 0
        %393 = vmatpush1.bf16.msra.mxu0 0
        %394 = vmatprep.subr.bf16.mxu0 0
        %395 = vmatpush1.bf16.msra.mxu0 0
        %396 = vmatprep.subr.bf16.mxu0 0
        %397 = vmatpush1.bf16.msra.mxu0 0
        %398 = vmatprep.subr.bf16.mxu0 0
        %399 = vmatpush1.bf16.msra.mxu0 0
        %400 = vmatprep.subr.bf16.mxu0 0
        %401 = vmatpush1.bf16.msra.mxu0 0
        %402 = vmatprep.subr.bf16.mxu0 0
        %403 = vmatpush1.bf16.msra.mxu0 0
        %404 = vmatprep.subr.bf16.mxu0 0
        %405 = vmatpush1.bf16.msra.mxu0 0
        %406 = vmatprep.subr.bf16.mxu0 0
        %407 = vmatpush1.bf16.msra.mxu0 0
        %408 = vmatprep.mubr.bf16.mxu0 0
        %409 = vmatmul.mubr.bf16.gmra.mrb[0].mxu0 %v371
        %v410 = vpop.f32.mrb[0].mxu0
        %v411 = vadd.f32 %v336, %v410
        %v412 = vpop.f32.mrb[0].mxu0
        %v413 = vpop.f32.mrb[0].mxu0
        %v414 = vadd.f32 %v341, %v413
        %v415 = vpop.f32.mrb[0].mxu0
        %416 = vmatprep.mubr.bf16.mxu0 0
        %417 = vmatmul.mubr.bf16.gmra.mrb[0].mxu0 %v374
        %v418 = vpop.f32.mrb[0].mxu0
        %v419 = vadd.f32 %v346, %v418
        %v420 = vpop.f32.mrb[0].mxu0
        %v421 = vpop.f32.mrb[0].mxu0
        %v422 = vadd.f32 %v351, %v421
        %v423 = vpop.f32.mrb[0].mxu0
        %424 = vdwg.mxu0
        %v425 = vmul.f32 %v411, 0.1
        %v426 = vmul.f32 %v414, 0.1
        %v427 = vmul.f32 %v419, 0.1
        %v428 = vmul.f32 %v422, 0.1
        %v429 = vmax.f32 %v411, %v425
        %v430 = vmax.f32 %v414, %v426
        %v431 = vmax.f32 %v419, %v427
        %v432 = vmax.f32 %v422, %v428
        %v433 = vld [vmem:[%s3] sm:$0xf]
        %v434 = vld [vmem:[%s3 + $0x4] sm:$0xf]
        %v435 = vld [vmem:[%s3 + $0x8] sm:$0xf]
        %v436 = vld [vmem:[%s3 + $0xc] sm:$0xf]
        %v437 = vpack.c.bf16 %v430, %v429
        %v438 = vpack.c.bf16 %v432, %v431
        %v439 = vld [vmem:[%s4] sm:$0xff]
        %v440 = vld [vmem:[%s4 + $0x8] sm:$0xff]
        %v441 = vld [vmem:[%s4 + $0x10] sm:$0xff]
        %v442 = vld [vmem:[%s4 + $0x18] sm:$0xff]
        %444 = vset.pattern.permute.xlu0 0
        %445 = vperm.xlu0 %444, %v439
        %v446 = vpop.permute.xlu0 %445
        %449 = vset.pattern.permute.xlu0 0
        %450 = vperm.xlu0 %449, %v440
        %v451 = vpop.permute.xlu0 %450
        %454 = vset.pattern.permute.xlu0 0
        %455 = vperm.xlu0 %454, %v441
        %v456 = vpop.permute.xlu0 %455
        %459 = vset.pattern.permute.xlu0 0
        %460 = vperm.xlu0 %459, %v442
        %v461 = vpop.permute.xlu0 %460
        %v467 = vunpack.c.l.b16 %v433
        %v468 = vunpack.c.l.b16 %v434
        %v469 = vunpack.c.l.b16 %v435
        %v470 = vunpack.c.l.b16 %v436
        %v471 = vpack.c.b16 %v468, %v467
        %v472 = vpack.c.b16 %v470, %v469
        %vm473 = vcmask 261120
        %v475 = vsel %vm473, %v471, 0
        %v478 = vsel %vm473, %v472, 0
        %480 = vmatprep.subr.bf16.mxu0 0
        %481 = vmatpush1.bf16.msra.mxu0 %v437
        %482 = vmatprep.subr.bf16.mxu0 0
        %483 = vmatpush1.bf16.msra.mxu0 %v438
        %484 = vmatprep.subr.bf16.mxu0 0
        %485 = vmatpush1.bf16.msra.mxu0 0
        %486 = vmatprep.subr.bf16.mxu0 0
        %487 = vmatpush1.bf16.msra.mxu0 0
        %488 = vmatprep.subr.bf16.mxu0 0
        %489 = vmatpush1.bf16.msra.mxu0 0
        %490 = vmatprep.subr.bf16.mxu0 0
        %491 = vmatpush1.bf16.msra.mxu0 0
        %492 = vmatprep.subr.bf16.mxu0 0
        %493 = vmatpush1.bf16.msra.mxu0 0
        %494 = vmatprep.subr.bf16.mxu0 0
        %495 = vmatpush1.bf16.msra.mxu0 0
        %496 = vmatprep.subr.bf16.mxu0 0
        %497 = vmatpush1.bf16.msra.mxu0 0
        %498 = vmatprep.subr.bf16.mxu0 0
        %499 = vmatpush1.bf16.msra.mxu0 0
        %500 = vmatprep.subr.bf16.mxu0 0
        %501 = vmatpush1.bf16.msra.mxu0 0
        %502 = vmatprep.subr.bf16.mxu0 0
        %503 = vmatpush1.bf16.msra.mxu0 0
        %504 = vmatprep.subr.bf16.mxu0 0
        %505 = vmatpush1.bf16.msra.mxu0 0
        %506 = vmatprep.subr.bf16.mxu0 0
        %507 = vmatpush1.bf16.msra.mxu0 0
        %508 = vmatprep.subr.bf16.mxu0 0
        %509 = vmatpush1.bf16.msra.mxu0 0
        %510 = vmatprep.subr.bf16.mxu0 0
        %511 = vmatpush1.bf16.msra.mxu0 0
        %512 = vmatprep.mubr.bf16.mxu0 0
        %513 = vmatmul.mubr.bf16.gmra.mrb[0].mxu0 %v475
        %v514 = vpop.f32.mrb[0].mxu0
        %v515 = vadd.f32 %v446, %v514
        %v516 = vpop.f32.mrb[0].mxu0
        %v517 = vpop.f32.mrb[0].mxu0
        %v518 = vadd.f32 %v451, %v517
        %v519 = vpop.f32.mrb[0].mxu0
        %520 = vmatprep.mubr.bf16.mxu0 0
        %521 = vmatmul.mubr.bf16.gmra.mrb[0].mxu0 %v478
        %v522 = vpop.f32.mrb[0].mxu0
        %v523 = vadd.f32 %v456, %v522
        %v524 = vpop.f32.mrb[0].mxu0
        %v525 = vpop.f32.mrb[0].mxu0
        %v526 = vadd.f32 %v461, %v525
        %v527 = vpop.f32.mrb[0].mxu0
        %528 = vdwg.mxu0
        %v529 = vmul.f32 %v515, 0.1
        %v530 = vmul.f32 %v518, 0.1
        %v531 = vmul.f32 %v523, 0.1
        %v532 = vmul.f32 %v526, 0.1
        %v533 = vmax.f32 %v515, %v529
        %v534 = vmax.f32 %v518, %v530
        %v535 = vmax.f32 %v523, %v531
        %v536 = vmax.f32 %v526, %v532
        %s537 = scalar_lea.vmem %s3, 16
        %v538 = vld [vmem:[%s537] sm:$0xf]
        %v539 = vld [vmem:[%s537 + $0x4] sm:$0xf]
        %v540 = vld [vmem:[%s537 + $0x8] sm:$0xf]
        %v541 = vld [vmem:[%s537 + $0xc] sm:$0xf]
        %v542 = vpack.c.bf16 %v534, %v533
        %v543 = vpack.c.bf16 %v536, %v535
        %s544 = scalar_lea.vmem %s4, 32
        %v545 = vld [vmem:[%s544] sm:$0xff]
        %v546 = vld [vmem:[%s544 + $0x8] sm:$0xff]
        %v547 = vld [vmem:[%s544 + $0x10] sm:$0xff]
        %v548 = vld [vmem:[%s544 + $0x18] sm:$0xff]
        %550 = vset.pattern.permute.xlu0 0
        %551 = vperm.xlu0 %550, %v545
        %v552 = vpop.permute.xlu0 %551
        %555 = vset.pattern.permute.xlu0 0
        %556 = vperm.xlu0 %555, %v546
        %v557 = vpop.permute.xlu0 %556
        %560 = vset.pattern.permute.xlu0 0
        %561 = vperm.xlu0 %560, %v547
        %v562 = vpop.permute.xlu0 %561
        %565 = vset.pattern.permute.xlu0 0
        %566 = vperm.xlu0 %565, %v548
        %v567 = vpop.permute.xlu0 %566
        %v573 = vunpack.c.l.b16 %v538
        %v574 = vunpack.c.l.b16 %v539
        %v575 = vunpack.c.l.b16 %v540
        %v576 = vunpack.c.l.b16 %v541
        %v577 = vpack.c.b16 %v574, %v573
        %v578 = vpack.c.b16 %v576, %v575
        %v580 = vsel %vm473, %v577, 0
        %v583 = vsel %vm473, %v578, 0
        %585 = vmatprep.subr.bf16.mxu0 0
        %586 = vmatpush1.bf16.msra.mxu0 %v542
        %587 = vmatprep.subr.bf16.mxu0 0
        %588 = vmatpush1.bf16.msra.mxu0 %v543
        %589 = vmatprep.subr.bf16.mxu0 0
        %590 = vmatpush1.bf16.msra.mxu0 0
        %591 = vmatprep.subr.bf16.mxu0 0
        %592 = vmatpush1.bf16.msra.mxu0 0
        %593 = vmatprep.subr.bf16.mxu0 0
        %594 = vmatpush1.bf16.msra.mxu0 0
        %595 = vmatprep.subr.bf16.mxu0 0
        %596 = vmatpush1.bf16.msra.mxu0 0
        %597 = vmatprep.subr.bf16.mxu0 0
        %598 = vmatpush1.bf16.msra.mxu0 0
        %599 = vmatprep.subr.bf16.mxu0 0
        %600 = vmatpush1.bf16.msra.mxu0 0
        %601 = vmatprep.subr.bf16.mxu0 0
        %602 = vmatpush1.bf16.msra.mxu0 0
        %603 = vmatprep.subr.bf16.mxu0 0
        %604 = vmatpush1.bf16.msra.mxu0 0
        %605 = vmatprep.subr.bf16.mxu0 0
        %606 = vmatpush1.bf16.msra.mxu0 0
        %607 = vmatprep.subr.bf16.mxu0 0
        %608 = vmatpush1.bf16.msra.mxu0 0
        %609 = vmatprep.subr.bf16.mxu0 0
        %610 = vmatpush1.bf16.msra.mxu0 0
        %611 = vmatprep.subr.bf16.mxu0 0
        %612 = vmatpush1.bf16.msra.mxu0 0
        %613 = vmatprep.subr.bf16.mxu0 0
        %614 = vmatpush1.bf16.msra.mxu0 0
        %615 = vmatprep.subr.bf16.mxu0 0
        %616 = vmatpush1.bf16.msra.mxu0 0
        %617 = vmatprep.mubr.bf16.mxu0 0
        %618 = vmatmul.mubr.bf16.gmra.mrb[0].mxu0 %v580
        %v619 = vpop.f32.mrb[0].mxu0
        %v620 = vadd.f32 %v552, %v619
        %v621 = vpop.f32.mrb[0].mxu0
        %v622 = vpop.f32.mrb[0].mxu0
        %v623 = vadd.f32 %v557, %v622
        %v624 = vpop.f32.mrb[0].mxu0
        %625 = vmatprep.mubr.bf16.mxu0 0
        %626 = vmatmul.mubr.bf16.gmra.mrb[0].mxu0 %v583
        %v627 = vpop.f32.mrb[0].mxu0
        %v628 = vadd.f32 %v562, %v627
        %v629 = vpop.f32.mrb[0].mxu0
        %v630 = vpop.f32.mrb[0].mxu0
        %v631 = vadd.f32 %v567, %v630
        %v632 = vpop.f32.mrb[0].mxu0
        %633 = vdwg.mxu0
        %v634 = vmul.f32 %v620, 0.1
        %v635 = vmul.f32 %v623, 0.1
        %v636 = vmul.f32 %v628, 0.1
        %v637 = vmul.f32 %v631, 0.1
        %v638 = vmax.f32 %v620, %v634
        %v639 = vmax.f32 %v623, %v635
        %v640 = vmax.f32 %v628, %v636
        %v641 = vmax.f32 %v631, %v637
        %v642 = vld [vmem:[%s5] sm:$0xf]
        %v643 = vpack.c.bf16 %v639, %v638
        %v644 = vpack.c.bf16 %v641, %v640
        %v645 = vld [vmem:[%s6] sm:$0xff]
        %647 = vset.pattern.permute.xlu0 0
        %648 = vperm.xlu0 %647, %v645
        %v649 = vpop.permute.xlu0 %648
        %v652 = vsel %vm473, %v642, 0
        %654 = vmatprep.subr.bf16.mxu0 0
        %655 = vmatpush1.bf16.msra.mxu0 %v643
        %656 = vmatprep.subr.bf16.mxu0 0
        %657 = vmatpush1.bf16.msra.mxu0 %v644
        %658 = vmatprep.subr.bf16.mxu0 0
        %659 = vmatpush1.bf16.msra.mxu0 0
        %660 = vmatprep.subr.bf16.mxu0 0
        %661 = vmatpush1.bf16.msra.mxu0 0
        %662 = vmatprep.subr.bf16.mxu0 0
        %663 = vmatpush1.bf16.msra.mxu0 0
        %664 = vmatprep.subr.bf16.mxu0 0
        %665 = vmatpush1.bf16.msra.mxu0 0
        %666 = vmatprep.subr.bf16.mxu0 0
        %667 = vmatpush1.bf16.msra.mxu0 0
        %668 = vmatprep.subr.bf16.mxu0 0
        %669 = vmatpush1.bf16.msra.mxu0 0
        %670 = vmatprep.subr.bf16.mxu0 0
        %671 = vmatpush1.bf16.msra.mxu0 0
        %672 = vmatprep.subr.bf16.mxu0 0
        %673 = vmatpush1.bf16.msra.mxu0 0
        %674 = vmatprep.subr.bf16.mxu0 0
        %675 = vmatpush1.bf16.msra.mxu0 0
        %676 = vmatprep.subr.bf16.mxu0 0
        %677 = vmatpush1.bf16.msra.mxu0 0
        %678 = vmatprep.subr.bf16.mxu0 0
        %679 = vmatpush1.bf16.msra.mxu0 0
        %680 = vmatprep.subr.bf16.mxu0 0
        %681 = vmatpush1.bf16.msra.mxu0 0
        %682 = vmatprep.subr.bf16.mxu0 0
        %683 = vmatpush1.bf16.msra.mxu0 0
        %684 = vmatprep.subr.bf16.mxu0 0
        %685 = vmatpush1.bf16.msra.mxu0 0
        %686 = vmatprep.mubr.bf16.mxu0 0
        %687 = vmatmul.mubr.bf16.gmra.mrb[0].mxu0 %v652
        %v688 = vpop.f32.mrb[0].mxu0
        %v689 = vadd.f32 %v649, %v688
        %v690 = vpop.f32.mrb[0].mxu0
        %v691 = vpop.f32.mrb[0].mxu0
        %v692 = vpop.f32.mrb[0].mxu0
        %693 = vdwg.mxu0
        %v694 = vmax.f32 %v689, 0.0
        %695 = vst [vmem:[%s321] sm:$0xff] %v694
        %s696 = sand.u32 %s181, 1
        %s697 = scalar_lea.sflag [#allocation4], %s696
        %s698 = sand.u32 %s181, 1
        %s699 = smul.addr %s698, 8
        %s700 = scalar_lea.vmem [#allocation3], %s699
        // Predicated region
        $region90: #{tpu_custom_call.1} parent=84 // pred_check
          %p701 = pneg %p191
        $region91: #{tpu_custom_call.1} parent=84 // pred_check_branch
          %703 = sbr.rel (%p701) target = $region93
        $region92: #{tpu_custom_call.1} parent=84 // pred_region
          %s705 = ssub.s32 128, 128
          %706 = vsyncadd %s697, %s705
          %s707 = smul.addr %s21, 128
          %s708 = scalar_lea.hbm %s7, %s707
          %s710 = sshll.u32 %s700, 4
          %s711 = int_to_ptr.vmem [resolvable:$true] %s710
          %713 = dma.vmem_to_hbm [thread:$0]  %s711, 128, %s708, %s697
        $region93: #{tpu_custom_call.1} parent=84 // pred_fallthru
          _
      $region85: #{tpu_custom_call.1} parent=5 // pred_fallthru
        _
      %p714 = scmp.le.s32.totalorder 2, %s16
      // Predicated region
      $region94: #{tpu_custom_call.1} parent=5 // pred_check
        %p715 = pneg %p714
      $region95: #{tpu_custom_call.1} parent=5 // pred_check_branch
        %717 = sbr.rel (%p715) target = $region97
      $region96: #{tpu_custom_call.1} parent=5 // pred_region
        %s718 = ssub.s32 %s16, 2
        // Predicated region
        $region98: #{tpu_custom_call.1} parent=96 // pred_check
          %p719 = pneg %p197
        $region99: #{tpu_custom_call.1} parent=96 // pred_check_branch
          %721 = sbr.rel (%p719) target = $region101
        $region100: #{tpu_custom_call.1} parent=96 // pred_region
          %s722 = sand.u32 %s182, 1
          %s723 = scalar_lea.sflag [#allocation4], %s722
          %s724 = sand.u32 %s182, 1
          %s725 = smul.addr %s724, 8
          %s726 = scalar_lea.vmem [#allocation3], %s725
          %727 = dma.done %s723, 128
        $region101: #{tpu_custom_call.1} parent=96 // pred_fallthru
          _
      $region97: #{tpu_custom_call.1} parent=5 // pred_fallthru
        _
    $region6: #{tpu_custom_call.1} parent=1 // loop_footer
      %s20 = sadd.s32 1, %s16
    $region7: #{tpu_custom_call.1} parent=1 // loop_footer_branch
      %15 = sbr.rel target = $region3
    $region8: #{tpu_custom_call.1} parent=1 // loop_exit
      _
    %728 = vsyncpa [#allocation4], 1
    %s729 = scalar_lea.sflag [#allocation4], 1
    %730 = vsyncpa %s729, 1

</llo_original>
